<compile_context>
chip_gen: v7x
topology: tpu7x:2x2x1
jax: 0.10.0
libtpu: 0.0.40
codegen_flags: <defaults>
</compile_context>

<pallas_src>
import jax
import jax.numpy as jnp
from jax import lax
from jax.experimental import pallas as pl
from jax.experimental.pallas import tpu as pltpu

HIDDEN = 32        # config.hidden_size
VOCAB = 256        # config.vocab_size
LN_EPS = 1e-12     # config.layer_norm_eps (BERT default)


def _gelu_exact(x):
    # PyTorch / transformers 'gelu' (erf-based, exact)
    return x * 0.5 * (1.0 + lax.erf(x * (1.0 / jnp.sqrt(2.0)).astype(x.dtype)))


def mlm_head_kernel(x_ref, w1_ref, b1_ref, gamma_ref, beta_ref,
                    wd_ref, bias_ref, o_ref, t_ref):
    """Fused transform (dense+gelu+LN) + decoder matmul.

    Grid = (M_tiles, V_tiles). The transform runs once per token tile
    (j == 0) into VMEM scratch t_ref, which stays resident across the vocab
    axis; each (i, j) step then does the (tm, H) x (H, tv) decoder matmul.
    """
    j = pl.program_id(1)

    @pl.when(j == 0)
    def _():
        x = x_ref[...]                                              # (tm, H)
        h = jnp.dot(x, w1_ref[...],
                    preferred_element_type=jnp.float32) + b1_ref[...]
        h = _gelu_exact(h)
        # One-pass LayerNorm statistics: mean = s/H, var = ss/H - mean^2.
        # Clamp var >= 0: f32 cancellation can make it slightly negative,
        # which with eps=1e-12 would feed a negative into rsqrt -> NaN.
        inv_h = 1.0 / h.shape[-1]
        s = jnp.sum(h, axis=-1, keepdims=True)
        ss = jnp.sum(h * h, axis=-1, keepdims=True)
        mean = s * inv_h
        var = jnp.maximum(ss * inv_h - mean * mean, 0.0)
        h = (h - mean) * lax.rsqrt(var + LN_EPS)
        t_ref[...] = h * gamma_ref[...] + beta_ref[...]

    # Decoder matmul; operands follow wd's dtype (f32 by default, bf16 if the
    # wrapper cast the decoder weights), accumulation stays f32.
    t = t_ref[...].astype(wd_ref.dtype)
    o_ref[...] = (
        jnp.dot(t, wd_ref[...], preferred_element_type=jnp.float32)
        + bias_ref[...]
    ).astype(o_ref.dtype)


def _choose_tm(M, tm_req):
    """Token tile: multiple of 8, clamped to padded M, and split into >= 2
    tiles when the whole thing would fit one tile (megacore on v7x)."""
    tm_req = max(8, (int(tm_req) // 8) * 8)
    Mp8 = pl.cdiv(M, 8) * 8
    if Mp8 <= tm_req:
        if Mp8 >= 16:
            return pl.cdiv(pl.cdiv(Mp8, 2), 8) * 8   # exactly 2 token tiles
        return Mp8
    return tm_req


def _choose_tv(V, H, tm, w_bytes, o_bytes, budget_bytes):
    """Largest vocab tile that divides V, is lane-dense (multiple of 128 or
    == V), and fits a double-buffered VMEM budget."""
    cands = [V]
    c = (V // 128) * 128
    while c >= 128:
        if c != V and V % c == 0:
            cands.append(c)
        c -= 128
    for tv in cands:
        foot = (2 * H * tv * w_bytes          # decoder weight (double-buffered)
                + 2 * tm * tv * o_bytes       # output tile   (double-buffered)
                + 2 * tv * 4                  # decoder bias
                + 3 * tm * H * 4              # x (2 bufs) + transform scratch
                + 2 * H * H * 4)              # dense weight
        if foot <= budget_bytes:
            return tv, foot
    return cands[-1], 0  # fallback: smallest lane-dense divisor


def bert_only_mlm_head(sequence_output, params, *, tm=2048, tv=None,
                       bf16_logits=False, bf16_decoder_weights=False):
    B, S, H = sequence_output.shape
    assert H == params["dense_w"].shape[0]
    M = B * S
    x = sequence_output.reshape(M, H).astype(jnp.float32)

    w1 = params["dense_w"]      # (H, H)  [in, out]
    b1 = params["dense_b"]      # (1, H)
    gamma = params["ln_gamma"]  # (1, H)
    beta = params["ln_beta"]    # (1, H)
    wd = params["decoder_w"]    # (H, V)  [in, out]
    bias = params["decoder_b"]  # (1, V)
    V = wd.shape[1]

    # Optional mem-bound levers (off by default: they relax the 1e-4 f32
    # parity with the PyTorch reference).
    out_dtype = jnp.bfloat16 if bf16_logits else jnp.float32
    if bf16_decoder_weights:
        wd = wd.astype(jnp.bfloat16)
    w_bytes = jnp.dtype(wd.dtype).itemsize
    o_bytes = jnp.dtype(out_dtype).itemsize

    # Tile selection.
    tm = _choose_tm(M, tm)
    Mp = pl.cdiv(M, tm) * tm
    if Mp != M:
        # Only pay the pad copy when tm does not divide M.
        x = jnp.pad(x, ((0, Mp - M), (0, 0)))

    vmem_budget = 24 << 20   # stay inside the 32 MiB scoped default
    if tv is None:
        tv, footprint = _choose_tv(V, H, tm, w_bytes, o_bytes, vmem_budget)
    else:
        footprint = 2 * H * tv * w_bytes + 2 * tm * tv * o_bytes + 3 * tm * H * 4
    assert V % tv == 0 and (tv == V or tv % 128 == 0)

    vmem_limit = None
    if footprint > vmem_budget:
        vmem_limit = min(int(footprint * 1.25) + (4 << 20), 100 << 20)

    grid = (Mp // tm, V // tv)

    # Decoder-weight spec: deeper buffering only helps when the vocab axis is
    # actually tiled (it gets re-streamed once per token tile).
    if grid[1] > 1:
        wd_spec = pl.BlockSpec((H, tv), lambda i, j: (0, j),
                               pipeline_mode=pl.Buffered(3))
    else:
        wd_spec = pl.BlockSpec((H, tv), lambda i, j: (0, j))

    cost = pl.CostEstimate(
        flops=2 * Mp * (H * H + H * V),
        transcendentals=Mp * H,                       # erf in gelu
        bytes_accessed=(Mp * H * 4                    # x
                        + H * H * 4 + 4 * H * 4       # transform params
                        + (Mp // tm) * H * V * w_bytes  # decoder w re-streams
                        + V * 4                       # decoder bias
                        + Mp * V * o_bytes),          # logits writeback
    )

    logits = pl.pallas_call(
        mlm_head_kernel,
        out_shape=jax.ShapeDtypeStruct((Mp, V), out_dtype),
        grid_spec=pltpu.PrefetchScalarGridSpec(
            num_scalar_prefetch=0,
            grid=grid,
            in_specs=[
                pl.BlockSpec((tm, H), lambda i, j: (i, 0)),   # x tile
                pl.BlockSpec((H, H), lambda i, j: (0, 0)),    # dense w
                pl.BlockSpec((1, H), lambda i, j: (0, 0)),    # dense b
                pl.BlockSpec((1, H), lambda i, j: (0, 0)),    # ln gamma
                pl.BlockSpec((1, H), lambda i, j: (0, 0)),    # ln beta
                wd_spec,                                      # decoder w tile
                pl.BlockSpec((1, tv), lambda i, j: (0, j)),   # decoder bias tile
            ],
            out_specs=pl.BlockSpec((tm, tv), lambda i, j: (i, j)),
            scratch_shapes=[pltpu.VMEM((tm, H), jnp.float32)],
        ),
        compiler_params=pltpu.CompilerParams(
            # token axis parallel (shards across v7x's 2 TCs), vocab axis
            # carries the VMEM-resident transform scratch -> arbitrary.
            dimension_semantics=("parallel", "arbitrary"),
            vmem_limit_bytes=vmem_limit,
        ),
        cost_estimate=cost,
    )(x, w1, b1, gamma, beta, wd, bias)

    return logits[:M].reshape(B, S, V)


def init_params(key):
    k1, k2, k3, k4 = jax.random.split(key, 4)
    scale = 0.02
    return {
        "dense_w": scale * jax.random.normal(k1, (HIDDEN, HIDDEN), jnp.float32),
        "dense_b": scale * jax.random.normal(k2, (1, HIDDEN), jnp.float32),
        "ln_gamma": jnp.ones((1, HIDDEN), jnp.float32),
        "ln_beta": jnp.zeros((1, HIDDEN), jnp.float32),
        "decoder_w": scale * jax.random.normal(k3, (HIDDEN, VOCAB), jnp.float32),
        "decoder_b": scale * jax.random.normal(k4, (1, VOCAB), jnp.float32),
    }


def reference(sequence_output, params):
    # plain-JAX reference (two-pass LayerNorm) for sanity checking
    x = sequence_output
    h = x @ params["dense_w"] + params["dense_b"]
    h = _gelu_exact(h)
    mean = jnp.mean(h, axis=-1, keepdims=True)
    var = jnp.mean((h - mean) ** 2, axis=-1, keepdims=True)
    h = (h - mean) / jnp.sqrt(var + LN_EPS)
    h = h * params["ln_gamma"] + params["ln_beta"]
    return h @ params["decoder_w"] + params["decoder_b"]


if __name__ == "__main__":
    key = jax.random.PRNGKey(0)
    kx, kp = jax.random.split(key)
    B, S = 2, 8
    sequence_output = jax.random.normal(kx, (B, S, HIDDEN), jnp.float32)
    params = init_params(kp)

    out = bert_only_mlm_head(sequence_output, params)
    out = jax.block_until_ready(out)

    ref = reference(sequence_output, params)
    assert out.shape == (B, S, VOCAB)
    assert jnp.allclose(out, ref, atol=1e-4, rtol=1e-4)
    print("KERNEL_OK")
</pallas_src>

<mosaic_0001>
module attributes {stable_mosaic.version = 11 : i64} {
  func.func @mlm_head_kernel(%arg0: i32, %arg1: i32, %arg2: memref<8x32xf32, #tpu.memory_space<vmem>>, %arg3: memref<32x32xf32, #tpu.memory_space<vmem>>, %arg4: memref<1x32xf32, #tpu.memory_space<vmem>>, %arg5: memref<1x32xf32, #tpu.memory_space<vmem>>, %arg6: memref<1x32xf32, #tpu.memory_space<vmem>>, %arg7: memref<32x256xf32, #tpu.memory_space<vmem>>, %arg8: memref<1x256xf32, #tpu.memory_space<vmem>>, %arg9: memref<8x256xf32, #tpu.memory_space<vmem>>, %arg10: memref<8x32xf32, #tpu.memory_space<vmem>>) attributes {dimension_semantics = [#tpu.dimension_semantics<parallel>, #tpu.dimension_semantics<arbitrary>], iteration_bounds = array<i64: 2, 1>, scalar_prefetch = 0 : i64, scratch_operands = 1 : i64, tpu.core_type = #tpu.core_type<tc>, window_params = [{transform_indices = @transform_0, window_bounds = array<i64: 8, 32>}, {pipeline_mode = #tpu.pipeline_mode<synchronous>, transform_indices = @transform_1, window_bounds = array<i64: 32, 32>}, {pipeline_mode = #tpu.pipeline_mode<synchronous>, transform_indices = @transform_2, window_bounds = array<i64: 1, 32>}, {pipeline_mode = #tpu.pipeline_mode<synchronous>, transform_indices = @transform_3, window_bounds = array<i64: 1, 32>}, {pipeline_mode = #tpu.pipeline_mode<synchronous>, transform_indices = @transform_4, window_bounds = array<i64: 1, 32>}, {transform_indices = @transform_5, window_bounds = array<i64: 32, 256>}, {transform_indices = @transform_6, window_bounds = array<i64: 1, 256>}, {transform_indices = @transform_7, window_bounds = array<i64: 8, 256>}]} {
    %c0_i32 = arith.constant 0 : i32
    %0 = arith.cmpi eq, %arg1, %c0_i32 : i32
    %1 = arith.extui %0 : i1 to i32
    %c0_i32_0 = arith.constant 0 : i32
    %2 = arith.cmpi ne, %1, %c0_i32_0 : i32
    scf.if %2 {
      %c0_8 = arith.constant 0 : index
      %c0_9 = arith.constant 0 : index
      %10 = vector.load %arg2[%c0_8, %c0_9] : memref<8x32xf32, #tpu.memory_space<vmem>>, vector<8x32xf32>
      %c0_10 = arith.constant 0 : index
      %c0_11 = arith.constant 0 : index
      %11 = vector.load %arg3[%c0_10, %c0_11] : memref<32x32xf32, #tpu.memory_space<vmem>>, vector<32x32xf32>
      %cst_12 = arith.constant dense<0.000000e+00> : vector<8x32xf32>
      %12 = tpu.matmul %10, %11, %cst_12 {dimension_numbers = #tpu.dot_dimension_numbers<[1], [0], [0], [1], [0, 0, 1, 1], [], []>} : vector<8x32xf32>, vector<32x32xf32>, vector<8x32xf32> -> vector<8x32xf32>
      %c0_13 = arith.constant 0 : index
      %c0_14 = arith.constant 0 : index
      %13 = vector.load %arg4[%c0_13, %c0_14] : memref<1x32xf32, #tpu.memory_space<vmem>>, vector<1x32xf32>
      %14 = vector.broadcast %13 : vector<1x32xf32> to vector<8x32xf32>
      %15 = arith.addf %12, %14 : vector<8x32xf32>
      %cst_15 = arith.constant 5.000000e-01 : f32
      %16 = vector.broadcast %cst_15 : f32 to vector<8x32xf32>
      %17 = arith.mulf %15, %16 : vector<8x32xf32>
      %cst_16 = arith.constant 2.000000e+00 : f32
      %18 = math.sqrt %cst_16 : f32
      %cst_17 = arith.constant 1.000000e+00 : f32
      %19 = arith.divf %cst_17, %18 : f32
      %20 = vector.broadcast %19 : f32 to vector<8x32xf32>
      %21 = arith.mulf %15, %20 : vector<8x32xf32>
      %22 = math.erf %21 : vector<8x32xf32>
      %cst_18 = arith.constant 1.000000e+00 : f32
      %23 = vector.broadcast %cst_18 : f32 to vector<8x32xf32>
      %24 = arith.addf %23, %22 : vector<8x32xf32>
      %25 = arith.mulf %17, %24 : vector<8x32xf32>
      %cst_19 = arith.constant dense<0.000000e+00> : vector<8xf32>
      %26 = vector.multi_reduction <add>, %25, %cst_19 [1] : vector<8x32xf32> to vector<8xf32>
      %27 = vector.shape_cast %26 : vector<8xf32> to vector<8x1xf32>
      %28 = arith.mulf %25, %25 : vector<8x32xf32>
      %cst_20 = arith.constant dense<0.000000e+00> : vector<8xf32>
      %29 = vector.multi_reduction <add>, %28, %cst_20 [1] : vector<8x32xf32> to vector<8xf32>
      %30 = vector.shape_cast %29 : vector<8xf32> to vector<8x1xf32>
      %cst_21 = arith.constant 3.125000e-02 : f32
      %31 = vector.broadcast %cst_21 : f32 to vector<8x1xf32>
      %32 = arith.mulf %27, %31 : vector<8x1xf32>
      %cst_22 = arith.constant 3.125000e-02 : f32
      %33 = vector.broadcast %cst_22 : f32 to vector<8x1xf32>
      %34 = arith.mulf %30, %33 : vector<8x1xf32>
      %35 = arith.mulf %32, %32 : vector<8x1xf32>
      %36 = arith.subf %34, %35 : vector<8x1xf32>
      %cst_23 = arith.constant 0.000000e+00 : f32
      %37 = vector.broadcast %cst_23 : f32 to vector<8x1xf32>
      %38 = arith.maximumf %36, %37 : vector<8x1xf32>
      %39 = vector.broadcast %32 : vector<8x1xf32> to vector<8x32xf32>
      %40 = arith.subf %25, %39 : vector<8x32xf32>
      %cst_24 = arith.constant 9.99999996E-13 : f32
      %41 = vector.broadcast %cst_24 : f32 to vector<8x1xf32>
      %42 = arith.addf %38, %41 : vector<8x1xf32>
      %43 = math.rsqrt %42 : vector<8x1xf32>
      %44 = vector.broadcast %43 : vector<8x1xf32> to vector<8x32xf32>
      %45 = arith.mulf %40, %44 : vector<8x32xf32>
      %c0_25 = arith.constant 0 : index
      %c0_26 = arith.constant 0 : index
      %46 = vector.load %arg5[%c0_25, %c0_26] : memref<1x32xf32, #tpu.memory_space<vmem>>, vector<1x32xf32>
      %47 = vector.broadcast %46 : vector<1x32xf32> to vector<8x32xf32>
      %48 = arith.mulf %45, %47 : vector<8x32xf32>
      %c0_27 = arith.constant 0 : index
      %c0_28 = arith.constant 0 : index
      %49 = vector.load %arg6[%c0_27, %c0_28] : memref<1x32xf32, #tpu.memory_space<vmem>>, vector<1x32xf32>
      %50 = vector.broadcast %49 : vector<1x32xf32> to vector<8x32xf32>
      %51 = arith.addf %48, %50 : vector<8x32xf32>
      %c0_29 = arith.constant 0 : index
      %c0_30 = arith.constant 0 : index
      %52 = vector.load %arg10[%c0_29, %c0_30] : memref<8x32xf32, #tpu.memory_space<vmem>>, vector<8x32xf32>
      tpu.vector_store %arg10[%c0_29, %c0_30], %51 {strides = array<i32>} : memref<8x32xf32, #tpu.memory_space<vmem>>, vector<8x32xf32>,
    } else {
    }
    %c0 = arith.constant 0 : index
    %c0_1 = arith.constant 0 : index
    %3 = vector.load %arg10[%c0, %c0_1] : memref<8x32xf32, #tpu.memory_space<vmem>>, vector<8x32xf32>
    %c0_2 = arith.constant 0 : index
    %c0_3 = arith.constant 0 : index
    %4 = vector.load %arg7[%c0_2, %c0_3] : memref<32x256xf32, #tpu.memory_space<vmem>>, vector<32x256xf32>
    %cst = arith.constant dense<0.000000e+00> : vector<8x256xf32>
    %5 = tpu.matmul %3, %4, %cst {dimension_numbers = #tpu.dot_dimension_numbers<[1], [0], [0], [1], [0, 0, 1, 1], [], []>} : vector<8x32xf32>, vector<32x256xf32>, vector<8x256xf32> -> vector<8x256xf32>
    %c0_4 = arith.constant 0 : index
    %c0_5 = arith.constant 0 : index
    %6 = vector.load %arg8[%c0_4, %c0_5] : memref<1x256xf32, #tpu.memory_space<vmem>>, vector<1x256xf32>
    %7 = vector.broadcast %6 : vector<1x256xf32> to vector<8x256xf32>
    %8 = arith.addf %5, %7 : vector<8x256xf32>
    %c0_6 = arith.constant 0 : index
    %c0_7 = arith.constant 0 : index
    %9 = vector.load %arg9[%c0_6, %c0_7] : memref<8x256xf32, #tpu.memory_space<vmem>>, vector<8x256xf32>
    tpu.vector_store %arg9[%c0_6, %c0_7], %8 {strides = array<i32>} : memref<8x256xf32, #tpu.memory_space<vmem>>, vector<8x256xf32>,
    return
  }
  func.func @transform_0(%arg0: i32, %arg1: i32) -> (i32, i32) {
    %c0_i32 = arith.constant 0 : i32
    %c0_i32_0 = arith.constant 0 : i32
    return %arg0, %c0_i32 : i32, i32
  }
  func.func @transform_1(%arg0: i32, %arg1: i32) -> (i32, i32) {
    %c0_i32 = arith.constant 0 : i32
    %c0_i32_0 = arith.constant 0 : i32
    %c0_i32_1 = arith.constant 0 : i32
    return %c0_i32, %c0_i32_0 : i32, i32
  }
  func.func @transform_2(%arg0: i32, %arg1: i32) -> (i32, i32) {
    %c0_i32 = arith.constant 0 : i32
    %c0_i32_0 = arith.constant 0 : i32
    %c0_i32_1 = arith.constant 0 : i32
    return %c0_i32, %c0_i32_0 : i32, i32
  }
  func.func @transform_3(%arg0: i32, %arg1: i32) -> (i32, i32) {
    %c0_i32 = arith.constant 0 : i32
    %c0_i32_0 = arith.constant 0 : i32
    %c0_i32_1 = arith.constant 0 : i32
    return %c0_i32, %c0_i32_0 : i32, i32
  }
  func.func @transform_4(%arg0: i32, %arg1: i32) -> (i32, i32) {
    %c0_i32 = arith.constant 0 : i32
    %c0_i32_0 = arith.constant 0 : i32
    %c0_i32_1 = arith.constant 0 : i32
    return %c0_i32, %c0_i32_0 : i32, i32
  }
  func.func @transform_5(%arg0: i32, %arg1: i32) -> (i32, i32) {
    %c0_i32 = arith.constant 0 : i32
    %c0_i32_0 = arith.constant 0 : i32
    return %c0_i32, %arg1 : i32, i32
  }
  func.func @transform_6(%arg0: i32, %arg1: i32) -> (i32, i32) {
    %c0_i32 = arith.constant 0 : i32
    %c0_i32_0 = arith.constant 0 : i32
    return %c0_i32, %arg1 : i32, i32
  }
  func.func @transform_7(%arg0: i32, %arg1: i32) -> (i32, i32) {
    %c0_i32 = arith.constant 0 : i32
    return %arg0, %arg1 : i32, i32
  }
}

</mosaic_0001>

<llo_original>
// kernel: tpu_custom_call.1
$region0: #{tpu_custom_call.1}
  #allocation0 [shape = 'u32[]', space=smem, size = 0x4, offset = 0x4, fixed_abs, tag = 'smem constant byte address 0x4 - core index']
  #allocation1 [shape = 'u32[144,128]{1,0:T(1,128)}', space=vmem, size = 0x12000, scoped, tag = 'internal scratch']
  #allocation2 [shape = 'f32[8,32]{1,0:T(8,128)}', space=vmem, size = 0x1000, scoped, tag = 'scratch operand']
  %s0 = inlined_call_operand.hbm [shape: f32[16,32], index: 0, kind: input, shape index: {}]
  %s1 = inlined_call_operand.hbm [shape: f32[32,32], index: 1, kind: input, shape index: {}]
  %s2 = inlined_call_operand.vmem [shape: f32[1,32], index: 2, kind: input, shape index: {}]
  %s3 = inlined_call_operand.vmem [shape: f32[1,32], index: 3, kind: input, shape index: {}]
  %s4 = inlined_call_operand.vmem [shape: f32[1,32], index: 4, kind: input, shape index: {}]
  %s5 = inlined_call_operand.hbm [shape: f32[32,256], index: 5, kind: input, shape index: {}]
  %s6 = inlined_call_operand.vmem [shape: f32[1,256], index: 6, kind: input, shape index: {}]
  %s7 = inlined_call_operand.hbm [shape: f32[16,256], index: 7, kind: output, shape index: {}]
  %s8 = sld [smem:[#allocation0]]
  $region77: #{tpu_custom_call.1} parent=0
    _
  %s10 = ssub.s32 1, %s8
  %s11 = scalar_select 0, %s10, %s8
  $region1: #{tpu_custom_call.1} parent=0
    #allocation3 [shape = 'u8[8192]{0}', space=vmem, size = 0x2000, scoped, tag = 'input window, operand 0']
    #allocation4 [shape = 's32[2]{0}', space=sflag, size = 0x8, scoped, tag = 'scoped memory for tpu_custom_call.1']
    #allocation5 [shape = 's32[2]{0}', space=sflag, size = 0x8, scoped, tag = 'scoped memory for tpu_custom_call.1']
    #allocation6 [shape = 'u8[16384]{0}', space=vmem, size = 0x4000, scoped, tag = 'input window, operand 1, single buffered']
    #allocation7 [shape = 's32[1]{0}', space=sflag, size = 0x4, scoped, tag = 'scoped memory for tpu_custom_call.1']
    #allocation8 [shape = 'u8[32768]{0}', space=vmem, size = 0x8000, scoped, tag = 'input window, operand 5, single buffered']
    #allocation9 [shape = 'u8[16384]{0}', space=vmem, size = 0x4000, scoped, tag = 'output window, operand 0']
    %12 = vsyncpa [#allocation4], 0
    %s13 = scalar_lea.sflag [#allocation4], 1
    %14 = vsyncpa %s13, 0
    %15 = vsyncpa [#allocation7], 0
    %16 = vsyncpa [#allocation5], 0
    %s17 = scalar_lea.sflag [#allocation5], 1
    %18 = vsyncpa %s17, 0
    loop: start=0, step=1, limit=4
    $region2: #{tpu_custom_call.1} parent=1 // loop_pre_header
      _
    $region3: #{tpu_custom_call.1} parent=1 // loop_header
      %s20 = sphi 0, %s24
      %p21 = scmp.ge.s32.totalorder %s20, 4
      %s27 = sphi 0, %s39
      %s28 = sphi 0, %s35
      %s29 = sphi 0, %s27
      %s30 = sphi 0, %s28
      %s31 = sphi 0, %s29
      %s32 = sphi 0, %s30
      %s42 = sphi 0, %s44
      %s45 = sphi 0, %s42
      %s46 = sphi 0, %s45
      %s62 = sphi 0, %s46
      %s66 = sphi 0, %s66
      %s68 = sphi 0, %s66
      %s69 = sphi 0, %s68
      %s83 = sphi 0, %s69
      %s87 = sphi 0, %s87
      %s89 = sphi 0, %s87
      %s90 = sphi 0, %s89
      %s104 = sphi 0, %s90
      %s108 = sphi 0, %s108
      %s110 = sphi 0, %s108
      %s111 = sphi 0, %s110
      %s125 = sphi 0, %s111
      %s129 = sphi 0, %s129
      %s131 = sphi 0, %s129
      %s132 = sphi 0, %s131
      %s146 = sphi 0, %s132
      %s152 = sphi 0, %s154
      %s155 = sphi 0, %s152
      %s156 = sphi 0, %s155
      %s172 = sphi 0, %s156
      %s178 = sphi 0, %s180
      %s181 = sphi 0, %s178
      %s182 = sphi 0, %s181
      %s198 = sphi 0, %s182
      %s206 = sphi 0, %s208
      %s209 = sphi 0, %s206
      %s210 = sphi 0, %s209
      %s226 = sphi 0, %s210
    $region4: #{tpu_custom_call.1} parent=1 // loop_header_branch
      %23 = sbr.rel (%p21) target = $region8
    $region5: #{tpu_custom_call.1} parent=1 // loop_body
      %s25 = ssub.s32 %s20, 1
      %s26 = ssub.s32 %s20, 2
      %s33 = sadd.s32 1, %s28
      %p34 = scmp.ge.s32.totalorder %s33, 1
      %s35 = scalar_select %p34, 0, %s33
      %s36 = sadd.s32 1, %s27
      %s37 = scalar_select %p34, %s36, %s27
      %p38 = scmp.ge.s32.totalorder %s37, 2
      %s39 = scalar_select %p38, 0, %s37
      %s40 = ssub.s32 %s27, %s39
      %p41 = scmp.eq.s32.totalorder %s40, 0
      %s43 = sadd.s32 %s42, 1
      %s44 = scalar_select %p41, %s42, %s43
      %p47 = pneg %p41
      %p48 = scmp.eq.s32.totalorder %s20, 1
      %p49 = por %p47, %p48
      %p50 = scmp.ne.s32.totalorder %s42, %s45
      %p51 = scmp.eq.s32.totalorder %s20, 0
      %p52 = por %p50, %p51
      %p53 = scmp.ne.s32.totalorder %s42, %s45
      %p54 = scmp.eq.s32.totalorder %s25, 1
      %p55 = por %p53, %p54
      %p56 = scmp.ne.s32.totalorder %s45, %s46
      %p57 = scmp.eq.s32.totalorder %s25, 0
      %p58 = por %p56, %p57
      %p59 = scmp.ne.s32.totalorder %s45, %s46
      %p60 = scmp.eq.s32.totalorder %s26, 1
      %p61 = por %p59, %p60
      %p63 = scmp.ne.s32.totalorder %s46, %s62
      %p64 = scmp.eq.s32.totalorder %s26, 0
      %p65 = por %p63, %p64
      %s67 = sadd.s32 %s66, 1
      %p70 = scmp.eq.s32.totalorder %s20, 1
      %p71 = scmp.ne.s32.totalorder %s66, %s68
      %p72 = scmp.eq.s32.totalorder %s20, 0
      %p73 = por %p71, %p72
      %p74 = scmp.ne.s32.totalorder %s66, %s68
      %p75 = scmp.eq.s32.totalorder %s25, 1
      %p76 = por %p74, %p75
      %p77 = scmp.ne.s32.totalorder %s68, %s69
      %p78 = scmp.eq.s32.totalorder %s25, 0
      %p79 = por %p77, %p78
      %p80 = scmp.ne.s32.totalorder %s68, %s69
      %p81 = scmp.eq.s32.totalorder %s26, 1
      %p82 = por %p80, %p81
      %p84 = scmp.ne.s32.totalorder %s69, %s83
      %p85 = scmp.eq.s32.totalorder %s26, 0
      %p86 = por %p84, %p85
      %s88 = sadd.s32 %s87, 1
      %p91 = scmp.eq.s32.totalorder %s20, 1
      %p92 = scmp.ne.s32.totalorder %s87, %s89
      %p93 = scmp.eq.s32.totalorder %s20, 0
      %p94 = por %p92, %p93
      %p95 = scmp.ne.s32.totalorder %s87, %s89
      %p96 = scmp.eq.s32.totalorder %s25, 1
      %p97 = por %p95, %p96
      %p98 = scmp.ne.s32.totalorder %s89, %s90
      %p99 = scmp.eq.s32.totalorder %s25, 0
      %p100 = por %p98, %p99
      %p101 = scmp.ne.s32.totalorder %s89, %s90
      %p102 = scmp.eq.s32.totalorder %s26, 1
      %p103 = por %p101, %p102
      %p105 = scmp.ne.s32.totalorder %s90, %s104
      %p106 = scmp.eq.s32.totalorder %s26, 0
      %p107 = por %p105, %p106
      %s109 = sadd.s32 %s108, 1
      %p112 = scmp.eq.s32.totalorder %s20, 1
      %p113 = scmp.ne.s32.totalorder %s108, %s110
      %p114 = scmp.eq.s32.totalorder %s20, 0
      %p115 = por %p113, %p114
      %p116 = scmp.ne.s32.totalorder %s108, %s110
      %p117 = scmp.eq.s32.totalorder %s25, 1
      %p118 = por %p116, %p117
      %p119 = scmp.ne.s32.totalorder %s110, %s111
      %p120 = scmp.eq.s32.totalorder %s25, 0
      %p121 = por %p119, %p120
      %p122 = scmp.ne.s32.totalorder %s110, %s111
      %p123 = scmp.eq.s32.totalorder %s26, 1
      %p124 = por %p122, %p123
      %p126 = scmp.ne.s32.totalorder %s111, %s125
      %p127 = scmp.eq.s32.totalorder %s26, 0
      %p128 = por %p126, %p127
      %s130 = sadd.s32 %s129, 1
      %p133 = scmp.eq.s32.totalorder %s20, 1
      %p134 = scmp.ne.s32.totalorder %s129, %s131
      %p135 = scmp.eq.s32.totalorder %s20, 0
      %p136 = por %p134, %p135
      %p137 = scmp.ne.s32.totalorder %s129, %s131
      %p138 = scmp.eq.s32.totalorder %s25, 1
      %p139 = por %p137, %p138
      %p140 = scmp.ne.s32.totalorder %s131, %s132
      %p141 = scmp.eq.s32.totalorder %s25, 0
      %p142 = por %p140, %p141
      %p143 = scmp.ne.s32.totalorder %s131, %s132
      %p144 = scmp.eq.s32.totalorder %s26, 1
      %p145 = por %p143, %p144
      %p147 = scmp.ne.s32.totalorder %s132, %s146
      %p148 = scmp.eq.s32.totalorder %s26, 0
      %p149 = por %p147, %p148
      %s150 = ssub.s32 %s28, %s35
      %p151 = scmp.eq.s32.totalorder %s150, 0
      %s153 = sadd.s32 %s152, 1
      %s154 = scalar_select %p151, %s152, %s153
      %p157 = pneg %p151
      %p158 = scmp.eq.s32.totalorder %s20, 1
      %p159 = por %p157, %p158
      %p160 = scmp.ne.s32.totalorder %s152, %s155
      %p161 = scmp.eq.s32.totalorder %s20, 0
      %p162 = por %p160, %p161
      %p163 = scmp.ne.s32.totalorder %s152, %s155
      %p164 = scmp.eq.s32.totalorder %s25, 1
      %p165 = por %p163, %p164
      %p166 = scmp.ne.s32.totalorder %s155, %s156
      %p167 = scmp.eq.s32.totalorder %s25, 0
      %p168 = por %p166, %p167
      %p169 = scmp.ne.s32.totalorder %s155, %s156
      %p170 = scmp.eq.s32.totalorder %s26, 1
      %p171 = por %p169, %p170
      %p173 = scmp.ne.s32.totalorder %s156, %s172
      %p174 = scmp.eq.s32.totalorder %s26, 0
      %p175 = por %p173, %p174
      %s176 = ssub.s32 %s28, %s35
      %p177 = scmp.eq.s32.totalorder %s176, 0
      %s179 = sadd.s32 %s178, 1
      %s180 = scalar_select %p177, %s178, %s179
      %p183 = pneg %p177
      %p184 = scmp.eq.s32.totalorder %s20, 1
      %p185 = por %p183, %p184
      %p186 = scmp.ne.s32.totalorder %s178, %s181
      %p187 = scmp.eq.s32.totalorder %s20, 0
      %p188 = por %p186, %p187
      %p189 = scmp.ne.s32.totalorder %s178, %s181
      %p190 = scmp.eq.s32.totalorder %s25, 1
      %p191 = por %p189, %p190
      %p192 = scmp.ne.s32.totalorder %s181, %s182
      %p193 = scmp.eq.s32.totalorder %s25, 0
      %p194 = por %p192, %p193
      %p195 = scmp.ne.s32.totalorder %s181, %s182
      %p196 = scmp.eq.s32.totalorder %s26, 1
      %p197 = por %p195, %p196
      %p199 = scmp.ne.s32.totalorder %s182, %s198
      %p200 = scmp.eq.s32.totalorder %s26, 0
      %p201 = por %p199, %p200
      %s202 = ssub.s32 %s27, %s39
      %s203 = ssub.s32 %s28, %s35
      %s204 = sor.u32 %s202, %s203
      %p205 = scmp.eq.s32.totalorder %s204, 0
      %s207 = sadd.s32 %s206, 1
      %s208 = scalar_select %p205, %s206, %s207
      %p211 = pneg %p205
      %p212 = scmp.eq.s32.totalorder %s20, 1
      %p213 = por %p211, %p212
      %p214 = scmp.ne.s32.totalorder %s206, %s209
      %p215 = scmp.eq.s32.totalorder %s20, 0
      %p216 = por %p214, %p215
      %p217 = scmp.ne.s32.totalorder %s206, %s209
      %p218 = scmp.eq.s32.totalorder %s25, 1
      %p219 = por %p217, %p218
      %p220 = scmp.ne.s32.totalorder %s209, %s210
      %p221 = scmp.eq.s32.totalorder %s25, 0
      %p222 = por %p220, %p221
      %p223 = scmp.ne.s32.totalorder %s209, %s210
      %p224 = scmp.eq.s32.totalorder %s26, 1
      %p225 = por %p223, %p224
      %p227 = scmp.ne.s32.totalorder %s210, %s226
      %p228 = scmp.eq.s32.totalorder %s26, 0
      %p229 = por %p227, %p228
      %p230 = scmp.le.s32.totalorder 1, %s20
      %p231 = scmp.lt.s32.totalorder %s20, 3
      %p232 = pnand %p230, %p231
      %p233 = pneg %p232
      // Predicated region
      $region9: #{tpu_custom_call.1} parent=5 // pred_check
        _
      $region10: #{tpu_custom_call.1} parent=5 // pred_check_branch
        %235 = sbr.rel (%p232) target = $region12
      $region11: #{tpu_custom_call.1} parent=5 // pred_region
        %s236 = ssub.s32 %s20, 1
        // Predicated region
        $region13: #{tpu_custom_call.1} parent=11 // pred_check
          %p237 = pneg %p79
        $region14: #{tpu_custom_call.1} parent=11 // pred_check_branch
          %239 = sbr.rel (%p237) target = $region16
        $region15: #{tpu_custom_call.1} parent=11 // pred_region
          %s241 = ssub.s32 512, 512
          %242 = vsyncadd [#allocation7], %s241
          %s243 = sshll.u32 [#allocation6], 4
          %s244 = int_to_ptr.vmem [resolvable:$true] %s243
          %249 = dma.hbm_to_vmem [thread:$0]  %s1, 512, %s244, [#allocation7], 128, 128, 8
        $region16: #{tpu_custom_call.1} parent=11 // pred_fallthru
          _
        // Predicated region
        $region17: #{tpu_custom_call.1} parent=11 // pred_check
          %p250 = pneg %p100
        $region18: #{tpu_custom_call.1} parent=11 // pred_check_branch
          %252 = sbr.rel (%p250) target = $region20
        $region19: #{tpu_custom_call.1} parent=11 // pred_region
          _
        $region20: #{tpu_custom_call.1} parent=11 // pred_fallthru
          _
        // Predicated region
        $region21: #{tpu_custom_call.1} parent=11 // pred_check
          %p253 = pneg %p121
        $region22: #{tpu_custom_call.1} parent=11 // pred_check_branch
          %255 = sbr.rel (%p253) target = $region24
        $region23: #{tpu_custom_call.1} parent=11 // pred_region
          _
        $region24: #{tpu_custom_call.1} parent=11 // pred_fallthru
          _
        // Predicated region
        $region25: #{tpu_custom_call.1} parent=11 // pred_check
          %p256 = pneg %p142
        $region26: #{tpu_custom_call.1} parent=11 // pred_check_branch
          %258 = sbr.rel (%p256) target = $region28
        $region27: #{tpu_custom_call.1} parent=11 // pred_region
          _
        $region28: #{tpu_custom_call.1} parent=11 // pred_fallthru
          _
        // Predicated region
        $region29: #{tpu_custom_call.1} parent=11 // pred_check
          %p259 = pneg %p168
        $region30: #{tpu_custom_call.1} parent=11 // pred_check_branch
          %261 = sbr.rel (%p259) target = $region32
        $region31: #{tpu_custom_call.1} parent=11 // pred_region
          %s262 = smul.u32 2, %s30
          %s264 = ssub.s32 1024, 1024
          %265 = vsyncadd [#allocation7], %s264
          %s266 = smul.addr %s262, 128
          %s267 = scalar_lea.hbm %s5, %s266
          %s268 = sshll.u32 [#allocation8], 4
          %s269 = int_to_ptr.vmem [resolvable:$true] %s268
          %274 = dma.hbm_to_vmem [thread:$0]  %s267, 1024, %s269, [#allocation7], 256, 256, 16
        $region32: #{tpu_custom_call.1} parent=11 // pred_fallthru
          _
        // Predicated region
        $region33: #{tpu_custom_call.1} parent=11 // pred_check
          %p275 = pneg %p194
        $region34: #{tpu_custom_call.1} parent=11 // pred_check_branch
          %277 = sbr.rel (%p275) target = $region36
        $region35: #{tpu_custom_call.1} parent=11 // pred_region
          %s278 = smul.u32 2, %s30
          %p279 = scmp.lt.s32.totalorder %s278, 1
          %s280 = scalar_select %p279, %s278, 1
          %s281 = scalar_lea.vmem %s6, %s280
          %s282 = smul.u32 2, %s30
        $region36: #{tpu_custom_call.1} parent=11 // pred_fallthru
          _
      $region12: #{tpu_custom_call.1} parent=5 // pred_fallthru
        _
      %p283 = scmp.lt.s32.totalorder %s20, 2
      // Predicated region
      $region37: #{tpu_custom_call.1} parent=5 // pred_check
        %p284 = pneg %p283
      $region38: #{tpu_custom_call.1} parent=5 // pred_check_branch
        %286 = sbr.rel (%p284) target = $region40
      $region39: #{tpu_custom_call.1} parent=5 // pred_region
        // Predicated region
        $region41: #{tpu_custom_call.1} parent=39 // pred_check
          %p287 = pneg %p52
        $region42: #{tpu_custom_call.1} parent=39 // pred_check_branch
          %289 = sbr.rel (%p287) target = $region44
        $region43: #{tpu_custom_call.1} parent=39 // pred_region
          %s290 = sand.u32 %s42, 1
          %s291 = scalar_lea.sflag [#allocation4], %s290
          %s292 = sand.u32 %s42, 1
          %s293 = smul.addr %s292, 8
          %s294 = scalar_lea.vmem [#allocation3], %s293
          %s296 = ssub.s32 128, 128
          %297 = vsyncadd %s291, %s296
          %s298 = smul.addr %s27, 128
          %s299 = scalar_lea.hbm %s0, %s298
          %s301 = sshll.u32 %s294, 4
          %s302 = int_to_ptr.vmem [resolvable:$true] %s301
          %304 = dma.hbm_to_vmem [thread:$0]  %s299, 128, %s302, %s291
        $region44: #{tpu_custom_call.1} parent=39 // pred_fallthru
          _
      $region40: #{tpu_custom_call.1} parent=5 // pred_fallthru
        _
      %p305 = scmp.le.s32.totalorder 1, %s20
      %p306 = scmp.lt.s32.totalorder %s20, 3
      %p307 = pnand %p305, %p306
      %p308 = pneg %p307
      // Predicated region
      $region45: #{tpu_custom_call.1} parent=5 // pred_check
        _
      $region46: #{tpu_custom_call.1} parent=5 // pred_check_branch
        %310 = sbr.rel (%p307) target = $region48
      $region47: #{tpu_custom_call.1} parent=5 // pred_region
        %s311 = ssub.s32 %s20, 1
        %s312 = sand.u32 %s45, 1
        %s313 = scalar_lea.sflag [#allocation4], %s312
        %s314 = sand.u32 %s45, 1
        %s315 = smul.addr %s314, 8
        %s316 = scalar_lea.vmem [#allocation3], %s315
        // Predicated region
        $region49: #{tpu_custom_call.1} parent=47 // pred_check
          %p317 = pneg %p58
        $region50: #{tpu_custom_call.1} parent=47 // pred_check_branch
          %319 = sbr.rel (%p317) target = $region52
        $region51: #{tpu_custom_call.1} parent=47 // pred_region
          %320 = dma.done %s313, 128
        $region52: #{tpu_custom_call.1} parent=47 // pred_fallthru
          _
        // Predicated region
        $region53: #{tpu_custom_call.1} parent=47 // pred_check
          %p321 = pneg %p79
        $region54: #{tpu_custom_call.1} parent=47 // pred_check_branch
          %323 = sbr.rel (%p321) target = $region56
        $region55: #{tpu_custom_call.1} parent=47 // pred_region
          %324 = dma.done [#allocation7], 512
        $region56: #{tpu_custom_call.1} parent=47 // pred_fallthru
          _
        // Predicated region
        $region57: #{tpu_custom_call.1} parent=47 // pred_check
          %p325 = pneg %p168
        $region58: #{tpu_custom_call.1} parent=47 // pred_check_branch
          %327 = sbr.rel (%p325) target = $region60
        $region59: #{tpu_custom_call.1} parent=47 // pred_region
          %328 = dma.done [#allocation7], 1024
        $region60: #{tpu_custom_call.1} parent=47 // pred_fallthru
          _
        %s329 = sand.u32 %s45, 1
        %s330 = scalar_lea.sflag [#allocation4], %s329
        %s331 = sand.u32 %s45, 1
        %s332 = smul.addr %s331, 8
        %s333 = scalar_lea.vmem [#allocation3], %s332
        %p334 = pneg %p58
        %p335 = pneg %p55
        %p336 = pneg %p79
        %p337 = pneg %p76
        %p338 = pneg %p100
        %p339 = pneg %p97
        %p340 = pneg %p121
        %p341 = pneg %p118
        %p342 = pneg %p142
        %p343 = pneg %p139
        %p344 = pneg %p168
        %p345 = pneg %p165
        %s346 = smul.u32 2, %s30
        %p347 = scmp.lt.s32.totalorder %s346, 1
        %s348 = scalar_select %p347, %s346, 1
        %s349 = scalar_lea.vmem %s6, %s348
        %p350 = pneg %p194
        %p351 = pneg %p191
        %p352 = pneg %p222
        %p353 = pneg %p219
        %s354 = sand.u32 %s209, 1
        %s355 = scalar_lea.sflag [#allocation5], %s354
        %s356 = sand.u32 %s209, 1
        %s357 = smul.addr %s356, 16
        %s358 = scalar_lea.vmem [#allocation9], %s357
        %s359 = smul.u32 2, %s30
        %s360 = smul.u32 2, %s30
        %p361 = scmp.lt.s32.totalorder %s360, 1
        %s362 = scalar_select %p361, %s360, 1
        %s363 = scalar_lea.vmem %s6, %s362
        %s364 = smul.u32 2, %s30
        %s365 = smul.u32 2, %s30
        %p366 = scmp.eq.s32.totalorder %s30, 0
        // Predicated region
        $region61: #{tpu_custom_call.1} parent=47 // pred_check
          %p367 = pneg %p366
        $region62: #{tpu_custom_call.1} parent=47 // pred_check_branch
          %369 = sbr.rel (%p367) target = $region64
        $region63: #{tpu_custom_call.1} parent=47 // pred_region
          %v370 = vld [vmem:[%s316] sm:$0xff]
          %v371 = vld [vmem:[#allocation6] sm:$0xff]
          %v372 = vld [vmem:[#allocation6 + $0x8] sm:$0xff]
          %v373 = vld [vmem:[#allocation6 + $0x10] sm:$0xff]
          %v374 = vld [vmem:[#allocation6 + $0x18] sm:$0xff]
          %v375 = vld [vmem:[%s2] sm:$0x1]
          %v377 = vlaneseq
          %v378 = vshrl.u32 %v377, 7
          %v379 = vsub.s32 0, %v378
          %v380 = vrot.slane %v375, %v379
          %vm382 = vcmask 261120
          %v384 = vsel %vm382, %v370, 0
          %386 = vmatprep.subr.mxu0 0.0
          %387 = vmatpush1.msra.mxu0 %v371
          %388 = vmatprep.subr.mxu0 0.0
          %389 = vmatpush1.msra.mxu0 %v372
          %390 = vmatprep.subr.mxu0 0.0
          %391 = vmatpush1.msra.mxu0 %v373
          %392 = vmatprep.subr.mxu0 0.0
          %393 = vmatpush1.msra.mxu0 %v374
          %394 = vmatprep.subr.mxu0 0.0
          %395 = vmatpush1.msra.mxu0 0.0
          %396 = vmatprep.subr.mxu0 0.0
          %397 = vmatpush1.msra.mxu0 0.0
          %398 = vmatprep.subr.mxu0 0.0
          %399 = vmatpush1.msra.mxu0 0.0
          %400 = vmatprep.subr.mxu0 0.0
          %401 = vmatpush1.msra.mxu0 0.0
          %402 = vmatprep.subr.mxu0 0.0
          %403 = vmatpush1.msra.mxu0 0.0
          %404 = vmatprep.subr.mxu0 0.0
          %405 = vmatpush1.msra.mxu0 0.0
          %406 = vmatprep.subr.mxu0 0.0
          %407 = vmatpush1.msra.mxu0 0.0
          %408 = vmatprep.subr.mxu0 0.0
          %409 = vmatpush1.msra.mxu0 0.0
          %410 = vmatprep.subr.mxu0 0.0
          %411 = vmatpush1.msra.mxu0 0.0
          %412 = vmatprep.subr.mxu0 0.0
          %413 = vmatpush1.msra.mxu0 0.0
          %414 = vmatprep.subr.mxu0 0.0
          %415 = vmatpush1.msra.mxu0 0.0
          %416 = vmatprep.subr.mxu0 0.0
          %417 = vmatpush1.msra.mxu0 0.0
          %418 = vmatprep.subr.mxu0 0.0
          %419 = vmatpush1.msra.mxu0 0.0
          %420 = vmatprep.subr.mxu0 0.0
          %421 = vmatpush1.msra.mxu0 0.0
          %422 = vmatprep.subr.mxu0 0.0
          %423 = vmatpush1.msra.mxu0 0.0
          %424 = vmatprep.subr.mxu0 0.0
          %425 = vmatpush1.msra.mxu0 0.0
          %426 = vmatprep.subr.mxu0 0.0
          %427 = vmatpush1.msra.mxu0 0.0
          %428 = vmatprep.subr.mxu0 0.0
          %429 = vmatpush1.msra.mxu0 0.0
          %430 = vmatprep.subr.mxu0 0.0
          %431 = vmatpush1.msra.mxu0 0.0
          %432 = vmatprep.subr.mxu0 0.0
          %433 = vmatpush1.msra.mxu0 0.0
          %434 = vmatprep.subr.mxu0 0.0
          %435 = vmatpush1.msra.mxu0 0.0
          %436 = vmatprep.subr.mxu0 0.0
          %437 = vmatpush1.msra.mxu0 0.0
          %438 = vmatprep.subr.mxu0 0.0
          %439 = vmatpush1.msra.mxu0 0.0
          %440 = vmatprep.subr.mxu0 0.0
          %441 = vmatpush1.msra.mxu0 0.0
          %442 = vmatprep.subr.mxu0 0.0
          %443 = vmatpush1.msra.mxu0 0.0
          %444 = vmatprep.subr.mxu0 0.0
          %445 = vmatpush1.msra.mxu0 0.0
          %446 = vmatprep.subr.mxu0 0.0
          %447 = vmatpush1.msra.mxu0 0.0
          %448 = vmatprep.subr.mxu0 0.0
          %449 = vmatpush1.msra.mxu0 0.0
          %450 = vmatprep.mubr.f32.mxu0 0.0
          %451 = vmatmul.mubr.f32.gmra.mrb[0].mxu0 %v384
          %v452 = vpop.f32.mrb[0].mxu0
          %v453 = vadd.f32 %v380, %v452
          %v454 = vpop.f32.mrb[0].mxu0
          %455 = vdwg.mxu0
          %v456 = vmul.f32 %v453, 0.5
          %v457 = vmul.f32 %v453, 0.70710677
          %v458 = verf.f32.pop %v457
          %v459 = vadd.f32 %v458, 1.0
          %v460 = vmul.f32 %v456, %v459
          %v461 = vsel %vm382, %v460, 0.0
          %462 = vadd.xlane.f32.xlu0 %v461
          %v463 = vpop.xlane.xlu0 %462
          %v464 = vmul.f32 %v460, %v460
          %v465 = vsel %vm382, %v464, 0.0
          %466 = vadd.xlane.f32.xlu0 %v465
          %v467 = vpop.xlane.xlu0 %466
          %v468 = vmul.f32 %v463, 0.03125
          %v469 = vmul.f32 %v467, 0.03125
          %v470 = vmul.f32 %v468, %v468
          %v471 = vsub.f32 %v469, %v470
          %v472 = vmax.f32 %v471, 0.0
          %v473 = vsub.f32 %v460, %v468
          %v474 = vadd.f32 %v472, 1e-12
          %v475 = vrsqrt.pop %v474
          %v476 = vmul.f32 %v473, %v475
          %v477 = vld [vmem:[%s3] sm:$0x1]
          %v479 = vlaneseq
          %v480 = vshrl.u32 %v479, 7
          %v481 = vsub.s32 0, %v480
          %v482 = vrot.slane %v477, %v481
          %v484 = vmul.f32 %v476, %v482
          %v485 = vld [vmem:[%s4] sm:$0x1]
          %v487 = vlaneseq
          %v488 = vshrl.u32 %v487, 7
          %v489 = vsub.s32 0, %v488
          %v490 = vrot.slane %v485, %v489
          %v492 = vadd.f32 %v484, %v490
          %493 = vst.msk [vmem:[#allocation2] sm:$0xff] %vm382, %v492
        $region64: #{tpu_custom_call.1} parent=47 // pred_fallthru
          _
        %v494 = vld [vmem:[#allocation2] sm:$0xff]
        %v495 = vld [vmem:[#allocation8] sm:$0xff]
        %v496 = vld [vmem:[#allocation8 + $0x8] sm:$0xff]
        %v497 = vld [vmem:[#allocation8 + $0x10] sm:$0xff]
        %v498 = vld [vmem:[#allocation8 + $0x18] sm:$0xff]
        %v499 = vld [vmem:[#allocation8 + $0x20] sm:$0xff]
        %v500 = vld [vmem:[#allocation8 + $0x28] sm:$0xff]
        %v501 = vld [vmem:[#allocation8 + $0x30] sm:$0xff]
        %v502 = vld [vmem:[#allocation8 + $0x38] sm:$0xff]
        %v503 = vld [vmem:[%s363] sm:$0x3]
        %v505 = vlaneseq
        %v506 = vshrl.u32 %v505, 7
        %v507 = vsub.s32 0, %v506
        %v508 = vrot.slane %v503, %v507
        %v509 = vlaneseq
        %v510 = vshrl.u32 %v509, 7
        %v511 = vsub.s32 1, %v510
        %v512 = vrot.slane %v503, %v511
        %vm515 = vcmask 261120
        %v517 = vsel %vm515, %v494, 0
        %519 = vmatprep.subr.mxu0 %v496
        %520 = vmatpush1.msra.mxu0 %v495
        %521 = vmatprep.subr.mxu0 %v498
        %522 = vmatpush1.msra.mxu0 %v497
        %523 = vmatprep.subr.mxu0 %v500
        %524 = vmatpush1.msra.mxu0 %v499
        %525 = vmatprep.subr.mxu0 %v502
        %526 = vmatpush1.msra.mxu0 %v501
        %527 = vmatprep.subr.mxu0 0.0
        %528 = vmatpush1.msra.mxu0 0.0
        %529 = vmatprep.subr.mxu0 0.0
        %530 = vmatpush1.msra.mxu0 0.0
        %531 = vmatprep.subr.mxu0 0.0
        %532 = vmatpush1.msra.mxu0 0.0
        %533 = vmatprep.subr.mxu0 0.0
        %534 = vmatpush1.msra.mxu0 0.0
        %535 = vmatprep.subr.mxu0 0.0
        %536 = vmatpush1.msra.mxu0 0.0
        %537 = vmatprep.subr.mxu0 0.0
        %538 = vmatpush1.msra.mxu0 0.0
        %539 = vmatprep.subr.mxu0 0.0
        %540 = vmatpush1.msra.mxu0 0.0
        %541 = vmatprep.subr.mxu0 0.0
        %542 = vmatpush1.msra.mxu0 0.0
        %543 = vmatprep.subr.mxu0 0.0
        %544 = vmatpush1.msra.mxu0 0.0
        %545 = vmatprep.subr.mxu0 0.0
        %546 = vmatpush1.msra.mxu0 0.0
        %547 = vmatprep.subr.mxu0 0.0
        %548 = vmatpush1.msra.mxu0 0.0
        %549 = vmatprep.subr.mxu0 0.0
        %550 = vmatpush1.msra.mxu0 0.0
        %551 = vmatprep.subr.mxu0 0.0
        %552 = vmatpush1.msra.mxu0 0.0
        %553 = vmatprep.subr.mxu0 0.0
        %554 = vmatpush1.msra.mxu0 0.0
        %555 = vmatprep.subr.mxu0 0.0
        %556 = vmatpush1.msra.mxu0 0.0
        %557 = vmatprep.subr.mxu0 0.0
        %558 = vmatpush1.msra.mxu0 0.0
        %559 = vmatprep.subr.mxu0 0.0
        %560 = vmatpush1.msra.mxu0 0.0
        %561 = vmatprep.subr.mxu0 0.0
        %562 = vmatpush1.msra.mxu0 0.0
        %563 = vmatprep.subr.mxu0 0.0
        %564 = vmatpush1.msra.mxu0 0.0
        %565 = vmatprep.subr.mxu0 0.0
        %566 = vmatpush1.msra.mxu0 0.0
        %567 = vmatprep.subr.mxu0 0.0
        %568 = vmatpush1.msra.mxu0 0.0
        %569 = vmatprep.subr.mxu0 0.0
        %570 = vmatpush1.msra.mxu0 0.0
        %571 = vmatprep.subr.mxu0 0.0
        %572 = vmatpush1.msra.mxu0 0.0
        %573 = vmatprep.subr.mxu0 0.0
        %574 = vmatpush1.msra.mxu0 0.0
        %575 = vmatprep.subr.mxu0 0.0
        %576 = vmatpush1.msra.mxu0 0.0
        %577 = vmatprep.subr.mxu0 0.0
        %578 = vmatpush1.msra.mxu0 0.0
        %579 = vmatprep.subr.mxu0 0.0
        %580 = vmatpush1.msra.mxu0 0.0
        %581 = vmatprep.subr.mxu0 0.0
        %582 = vmatpush1.msra.mxu0 0.0
        %583 = vmatprep.mubr.f32.mxu0 0.0
        %584 = vmatmul.mubr.f32.gmra.mrb[0].mxu0 %v517
        %v585 = vpop.f32.mrb[0].mxu0
        %v586 = vadd.f32 %v508, %v585
        %v587 = vpop.f32.mrb[0].mxu0
        %v588 = vadd.f32 %v512, %v587
        %589 = vdwg.mxu0
        %590 = vst [vmem:[%s358] sm:$0xff] %v586
        %591 = vst [vmem:[%s358 + $0x8] sm:$0xff] %v588
        %s592 = sand.u32 %s209, 1
        %s593 = scalar_lea.sflag [#allocation5], %s592
        %s594 = sand.u32 %s209, 1
        %s595 = smul.addr %s594, 16
        %s596 = scalar_lea.vmem [#allocation9], %s595
        // Predicated region
        $region65: #{tpu_custom_call.1} parent=47 // pred_check
          %p597 = pneg %p219
        $region66: #{tpu_custom_call.1} parent=47 // pred_check_branch
          %599 = sbr.rel (%p597) target = $region68
        $region67: #{tpu_custom_call.1} parent=47 // pred_region
          %s600 = smul.u32 2, %s30
          %s602 = ssub.s32 256, 256
          %603 = vsyncadd %s593, %s602
          %s604 = smul.addr %s29, 2
          %s605 = sadd.s32 %s600, %s604
          %s606 = smul.addr %s605, 128
          %s607 = scalar_lea.hbm %s7, %s606
          %s609 = sshll.u32 %s596, 4
          %s610 = int_to_ptr.vmem [resolvable:$true] %s609
          %612 = dma.vmem_to_hbm [thread:$0]  %s610, 256, %s607, %s593
        $region68: #{tpu_custom_call.1} parent=47 // pred_fallthru
          _
      $region48: #{tpu_custom_call.1} parent=5 // pred_fallthru
        _
      %p613 = scmp.le.s32.totalorder 2, %s20
      // Predicated region
      $region69: #{tpu_custom_call.1} parent=5 // pred_check
        %p614 = pneg %p613
      $region70: #{tpu_custom_call.1} parent=5 // pred_check_branch
        %616 = sbr.rel (%p614) target = $region72
      $region71: #{tpu_custom_call.1} parent=5 // pred_region
        %s617 = ssub.s32 %s20, 2
        // Predicated region
        $region73: #{tpu_custom_call.1} parent=71 // pred_check
          %p618 = pneg %p225
        $region74: #{tpu_custom_call.1} parent=71 // pred_check_branch
          %620 = sbr.rel (%p618) target = $region76
        $region75: #{tpu_custom_call.1} parent=71 // pred_region
          %s621 = sand.u32 %s210, 1
          %s622 = scalar_lea.sflag [#allocation5], %s621
          %s623 = sand.u32 %s210, 1
          %s624 = smul.addr %s623, 16
          %s625 = scalar_lea.vmem [#allocation9], %s624
          %626 = dma.done %s622, 256
        $region76: #{tpu_custom_call.1} parent=71 // pred_fallthru
          _
      $region72: #{tpu_custom_call.1} parent=5 // pred_fallthru
        _
    $region6: #{tpu_custom_call.1} parent=1 // loop_footer
      %s24 = sadd.s32 1, %s20
    $region7: #{tpu_custom_call.1} parent=1 // loop_footer_branch
      %19 = sbr.rel target = $region3
    $region8: #{tpu_custom_call.1} parent=1 // loop_exit
      _
    %627 = vsyncpa [#allocation4], 1
    %s628 = scalar_lea.sflag [#allocation4], 1
    %629 = vsyncpa %s628, 1
    %630 = vsyncpa [#allocation7], 1
    %631 = vsyncpa [#allocation5], 1
    %s632 = scalar_lea.sflag [#allocation5], 1
    %633 = vsyncpa %s632, 1

</llo_original>
